<compile_context>
chip_gen: v5e
topology: v5e:2x2
jax: 0.10.0
libtpu: 0.0.40
codegen_flags: <defaults>
</compile_context>

<pallas_src>
import numpy as np
import jax
import jax.numpy as jnp
from jax.experimental import pallas as pl
from jax.experimental.pallas import tpu as pltpu


# ---------------------------------------------------------------------------
# Kernel
# ---------------------------------------------------------------------------
def expval_kernel(x_ref, m_ref, s_ref, o_ref, acc_ref):
    # x_ref:   (tB, tD)      batch tile x state tile
    # m_ref:   (tD, n_meas)  +/-1 masks tile, already (D, n_meas) oriented
    # s_ref:   (1,  n_meas)  scaling (whole, tiny)
    # o_ref:   (tB, n_meas)  output tile (resident across the state axis)
    # acc_ref: (tB, n_meas)  f32 scratch accumulator
    k = pl.program_id(1)

    @pl.when(k == 0)
    def _init():
        acc_ref[...] = jnp.zeros_like(acc_ref)

    acc_ref[...] += jnp.dot(
        x_ref[...], m_ref[...], preferred_element_type=jnp.float32
    )

    @pl.when(k == pl.num_programs(1) - 1)
    def _finalize():
        o_ref[...] = ((acc_ref[...] * s_ref[...] + 1.0) * 0.5).astype(o_ref.dtype)


# ---------------------------------------------------------------------------
# Host-side helpers
# ---------------------------------------------------------------------------
def make_masks(n_qubits: int, n_meas: int) -> np.ndarray:
    """(n_meas, 2**n_qubits) matrix of +/-1, matching the PyTorch __init__."""
    assert 1 <= n_meas <= n_qubits, "module requires n_meas <= n_qubits"
    idx = np.arange(2 ** n_qubits, dtype=np.int64)
    shifts = (n_qubits - 1 - np.arange(n_meas, dtype=np.int64))[:, None]
    bits = (idx[None, :] >> shifts) & 1
    return (2.0 * bits - 1.0).astype(np.float32)


def _round_up(n: int, m: int) -> int:
    return ((n + m - 1) // m) * m


def _prev_pow2(n: int) -> int:
    return 1 << (int(n).bit_length() - 1)


def _pick_tb(b_pad: int) -> int:
    """Batch tile: multiple of 8, <= 256, divides b_pad, >=2 tiles when b_pad >= 16."""
    cap = 256
    if b_pad >= 16:
        cap = min(cap, b_pad // 2)      # >= 2 batch tiles -> both v7x TensorCores busy
    cap = max(8, (cap // 8) * 8)
    t = max(8, (min(cap, b_pad) // 8) * 8)
    while b_pad % t != 0:               # b_pad is a multiple of 8 -> terminates at 8
        t -= 8
    return t


def _pick_td(d: int, tb: int, itemsize: int, budget_bytes: int) -> int:
    """State tile: power of two, >= 128 (or full dim), sized so the tD-scaled VMEM
    buffers (double-buffered x tiles + lane-padded masks tiles) fit the budget."""
    if d <= 128 or (d & (d - 1)) != 0:
        return d                         # full dim is always a legal block
    per_td = 2 * tb * itemsize + 2 * 128 * 4   # 2 x bufs + 2 masks bufs (lanes 4->128)
    cap = max(128, budget_bytes // per_td)
    return max(128, min(d, _prev_pow2(cap)))


def exp_val_layer_pallas(x: jax.Array, masks_t: jax.Array, scaling: jax.Array,
                         *, x_vmem_budget_bytes: int = 24 << 20) -> jax.Array:
    """x: (B, 2**n_qubits) or (2**n_qubits,) f32;
    masks_t: (2**n_qubits, n_meas) f32 (pre-stored, NOT transposed per call);
    scaling: (n_meas,) f32."""
    single = (x.ndim == 1)
    if single:
        x = x[None, :]

    B, D = x.shape
    Dm, n_meas = masks_t.shape
    assert Dm == D, "masks_t must be (2**n_qubits, n_meas)"
    assert scaling.shape == (n_meas,)

    itemsize = x.dtype.itemsize

    # Pad batch to a multiple of 8 so the (8,128) block rule holds for any B.
    B_pad = _round_up(max(B, 1), 8)
    if B_pad != B:
        x = jnp.pad(x, ((0, B_pad - B), (0, 0)))

    tB = _pick_tb(B_pad)
    tD = _pick_td(D, tB, itemsize, x_vmem_budget_bytes)
    grid = (B_pad // tB, D // tD)

    scaling2d = scaling.reshape(1, n_meas)

    # Real (lane-padded) VMEM footprint -> explicit scoped-VMEM limit with headroom.
    lane_m = _round_up(n_meas, 128)
    est = (2 * tB * tD * itemsize          # x, double-buffered
           + 2 * tD * lane_m * 4           # masks blocks, lanes padded n_meas -> 128
           + 3 * tB * lane_m * 4           # 2 out blocks + acc scratch (lane-padded)
           + 2 * 8 * 128 * 4)              # scaling blocks
    vmem_limit = min(max(int(est * 1.25) + (2 << 20), 32 << 20), 48 << 20)

    cost = pl.CostEstimate(
        flops=2 * B_pad * D * n_meas,
        transcendentals=0,
        bytes_accessed=(itemsize * B_pad * D
                        + 4 * D * n_meas * (B_pad // tB)
                        + 4 * B_pad * n_meas),
    )

    out = pl.pallas_call(
        expval_kernel,
        out_shape=jax.ShapeDtypeStruct((B_pad, n_meas), x.dtype),
        grid=grid,
        in_specs=[
            pl.BlockSpec((tB, tD), lambda i, k: (i, k)),      # x
            pl.BlockSpec((tD, n_meas), lambda i, k: (k, 0)),  # masks (D, n_meas)
            pl.BlockSpec((1, n_meas), lambda i, k: (0, 0)),   # scaling
        ],
        out_specs=pl.BlockSpec((tB, n_meas), lambda i, k: (i, 0)),
        scratch_shapes=[pltpu.VMEM((tB, n_meas), jnp.float32)],
        compiler_params=pltpu.CompilerParams(
            dimension_semantics=("parallel", "arbitrary"),
            vmem_limit_bytes=vmem_limit,
        ),
        cost_estimate=cost,
    )(x, masks_t, scaling2d)

    out = out[:B]
    return out[0] if single else out


def exp_val_layer_ref(x, masks, scaling):
    """Float64 NumPy reference (masks in PyTorch (n_meas, D) layout)."""
    x64 = np.asarray(x, np.float64)
    m64 = np.asarray(masks, np.float64)
    s64 = np.asarray(scaling, np.float64)
    single = x64.ndim == 1
    if single:
        x64 = x64[None, :]
    out = (x64 @ m64.T) * s64[None, :]
    out = (out + 1.0) / 2.0
    return out[0] if single else out


# ---------------------------------------------------------------------------
# Demo / self-test
# ---------------------------------------------------------------------------
if __name__ == "__main__":
    key = jax.random.PRNGKey(0)
    k1, k2, k3 = jax.random.split(key, 3)

    # 1) Module-default sizes: n_qubits=3, n_meas=3, batch=2.
    nq, nm, bs = 3, 3, 2
    masks = make_masks(nq, nm)                               # (nm, 2**nq), torch layout
    masks_t = jnp.asarray(np.ascontiguousarray(masks.T))     # (2**nq, nm), built ONCE
    scaling = jnp.ones((nm,), jnp.float32)
    x = jax.random.uniform(k1, (bs, 2 ** nq), dtype=jnp.float32)

    out = jax.block_until_ready(exp_val_layer_pallas(x, masks_t, scaling))
    ref = exp_val_layer_ref(np.asarray(x), masks, np.asarray(scaling))
    np.testing.assert_allclose(np.asarray(out), ref, rtol=1e-5, atol=1e-5)

    # 2) Single-sample (1-D input) path.
    xv = jax.random.uniform(k2, (2 ** nq,), dtype=jnp.float32)
    outv = jax.block_until_ready(exp_val_layer_pallas(xv, masks_t, scaling))
    refv = exp_val_layer_ref(np.asarray(xv), masks, np.asarray(scaling))
    np.testing.assert_allclose(np.asarray(outv), refv, rtol=1e-5, atol=1e-5)

    # 3) Larger case exercising the tiled grid: n_qubits=13 -> D=8192, batch=512
    #    (2 batch tiles).  Tolerances sized for f32/MXU accumulation error over 8192
    #    terms with cancellation (compared against a float64 reference).
    nq2, nm2, bs2 = 13, 4, 512
    masks2 = make_masks(nq2, nm2)
    masks2_t = jnp.asarray(np.ascontiguousarray(masks2.T))
    scaling2 = jnp.linspace(0.5, 2.0, nm2, dtype=jnp.float32)
    x2 = jax.random.uniform(k3, (bs2, 2 ** nq2), dtype=jnp.float32)
    ref2 = exp_val_layer_ref(np.asarray(x2), masks2, np.asarray(scaling2))

    # 3a) Default budget: large tD (single K tile per batch tile).
    out2a = jax.block_until_ready(exp_val_layer_pallas(x2, masks2_t, scaling2))
    np.testing.assert_allclose(np.asarray(out2a), ref2, rtol=2e-3, atol=1e-2)

    # 3b) Reduced budget: multi-K accumulation path (scratch carried across k steps).
    out2b = jax.block_until_ready(
        exp_val_layer_pallas(x2, masks2_t, scaling2, x_vmem_budget_bytes=3 << 20))
    np.testing.assert_allclose(np.asarray(out2b), ref2, rtol=2e-3, atol=1e-2)

    print("KERNEL_OK")
</pallas_src>

<mosaic_0001>
module attributes {stable_mosaic.version = 11 : i64} {
  func.func @expval_kernel(%arg0: i32, %arg1: i32, %arg2: memref<8x8xf32, #tpu.memory_space<vmem>>, %arg3: memref<8x3xf32, #tpu.memory_space<vmem>>, %arg4: memref<1x3xf32, #tpu.memory_space<vmem>>, %arg5: memref<8x3xf32, #tpu.memory_space<vmem>>, %arg6: memref<8x3xf32, #tpu.memory_space<vmem>>) attributes {dimension_semantics = [#tpu.dimension_semantics<parallel>, #tpu.dimension_semantics<arbitrary>], iteration_bounds = array<i64: 1, 1>, scalar_prefetch = 0 : i64, scratch_operands = 1 : i64, tpu.core_type = #tpu.core_type<tc>, window_params = [{transform_indices = @transform_0, window_bounds = array<i64: 8, 8>}, {transform_indices = @transform_1, window_bounds = array<i64: 8, 3>}, {pipeline_mode = #tpu.pipeline_mode<synchronous>, transform_indices = @transform_2, window_bounds = array<i64: 1, 3>}, {transform_indices = @transform_3, window_bounds = array<i64: 8, 3>}]} {
    %c0_i32 = arith.constant 0 : i32
    %0 = arith.cmpi eq, %arg1, %c0_i32 : i32
    %1 = arith.extui %0 : i1 to i32
    %c0_i32_0 = arith.constant 0 : i32
    %2 = arith.cmpi ne, %1, %c0_i32_0 : i32
    scf.if %2 {
      %cst_10 = arith.constant 0.000000e+00 : f32
      %12 = vector.broadcast %cst_10 : f32 to vector<8x3xf32>
      %c0_11 = arith.constant 0 : index
      %c0_12 = arith.constant 0 : index
      %13 = vector.load %arg6[%c0_11, %c0_12] : memref<8x3xf32, #tpu.memory_space<vmem>>, vector<8x3xf32>
      tpu.vector_store %arg6[%c0_11, %c0_12], %12 {strides = array<i32>} : memref<8x3xf32, #tpu.memory_space<vmem>>, vector<8x3xf32>,
    } else {
    }
    %c0 = arith.constant 0 : index
    %c0_1 = arith.constant 0 : index
    %3 = vector.load %arg6[%c0, %c0_1] : memref<8x3xf32, #tpu.memory_space<vmem>>, vector<8x3xf32>
    %c0_2 = arith.constant 0 : index
    %c0_3 = arith.constant 0 : index
    %4 = vector.load %arg2[%c0_2, %c0_3] : memref<8x8xf32, #tpu.memory_space<vmem>>, vector<8x8xf32>
    %c0_4 = arith.constant 0 : index
    %c0_5 = arith.constant 0 : index
    %5 = vector.load %arg3[%c0_4, %c0_5] : memref<8x3xf32, #tpu.memory_space<vmem>>, vector<8x3xf32>
    %cst = arith.constant dense<0.000000e+00> : vector<8x3xf32>
    %6 = tpu.matmul %4, %5, %cst {dimension_numbers = #tpu.dot_dimension_numbers<[1], [0], [0], [1], [0, 0, 1, 1], [], []>} : vector<8x8xf32>, vector<8x3xf32>, vector<8x3xf32> -> vector<8x3xf32>
    %7 = arith.addf %3, %6 : vector<8x3xf32>
    %c0_6 = arith.constant 0 : index
    %c0_7 = arith.constant 0 : index
    %8 = vector.load %arg6[%c0_6, %c0_7] : memref<8x3xf32, #tpu.memory_space<vmem>>, vector<8x3xf32>
    tpu.vector_store %arg6[%c0_6, %c0_7], %7 {strides = array<i32>} : memref<8x3xf32, #tpu.memory_space<vmem>>, vector<8x3xf32>,
    %c0_i32_8 = arith.constant 0 : i32
    %9 = arith.cmpi eq, %arg1, %c0_i32_8 : i32
    %10 = arith.extui %9 : i1 to i32
    %c0_i32_9 = arith.constant 0 : i32
    %11 = arith.cmpi ne, %10, %c0_i32_9 : i32
    scf.if %11 {
      %c0_10 = arith.constant 0 : index
      %c0_11 = arith.constant 0 : index
      %12 = vector.load %arg6[%c0_10, %c0_11] : memref<8x3xf32, #tpu.memory_space<vmem>>, vector<8x3xf32>
      %c0_12 = arith.constant 0 : index
      %c0_13 = arith.constant 0 : index
      %13 = vector.load %arg4[%c0_12, %c0_13] : memref<1x3xf32, #tpu.memory_space<vmem>>, vector<1x3xf32>
      %14 = vector.broadcast %13 : vector<1x3xf32> to vector<8x3xf32>
      %15 = arith.mulf %12, %14 : vector<8x3xf32>
      %cst_14 = arith.constant 1.000000e+00 : f32
      %16 = vector.broadcast %cst_14 : f32 to vector<8x3xf32>
      %17 = arith.addf %15, %16 : vector<8x3xf32>
      %cst_15 = arith.constant 5.000000e-01 : f32
      %18 = vector.broadcast %cst_15 : f32 to vector<8x3xf32>
      %19 = arith.mulf %17, %18 : vector<8x3xf32>
      %c0_16 = arith.constant 0 : index
      %c0_17 = arith.constant 0 : index
      %20 = vector.load %arg5[%c0_16, %c0_17] : memref<8x3xf32, #tpu.memory_space<vmem>>, vector<8x3xf32>
      tpu.vector_store %arg5[%c0_16, %c0_17], %19 {strides = array<i32>} : memref<8x3xf32, #tpu.memory_space<vmem>>, vector<8x3xf32>,
    } else {
    }
    return
  }
  func.func @transform_0(%arg0: i32, %arg1: i32) -> (i32, i32) {
    %c0_i32 = arith.constant 0 : i32
    return %arg0, %arg1 : i32, i32
  }
  func.func @transform_1(%arg0: i32, %arg1: i32) -> (i32, i32) {
    %c0_i32 = arith.constant 0 : i32
    %c0_i32_0 = arith.constant 0 : i32
    return %arg1, %c0_i32 : i32, i32
  }
  func.func @transform_2(%arg0: i32, %arg1: i32) -> (i32, i32) {
    %c0_i32 = arith.constant 0 : i32
    %c0_i32_0 = arith.constant 0 : i32
    %c0_i32_1 = arith.constant 0 : i32
    return %c0_i32, %c0_i32_0 : i32, i32
  }
  func.func @transform_3(%arg0: i32, %arg1: i32) -> (i32, i32) {
    %c0_i32 = arith.constant 0 : i32
    %c0_i32_0 = arith.constant 0 : i32
    return %arg0, %c0_i32 : i32, i32
  }
}

</mosaic_0001>

<llo_original>
// kernel: tpu_custom_call.1
$region0: #{tpu_custom_call.1}
  #allocation0 [shape = 'u32[]', space=smem, size = 0x4, offset = 0x4, fixed_abs, tag = 'smem constant byte address 0x4 - core index']
  #allocation1 [shape = 'u32[72,128]{1,0:T(1,128)}', space=vmem, size = 0x9000, scoped, tag = 'internal scratch']
  #allocation2 [shape = 'f32[8,3]{1,0:T(8,128)}', space=vmem, size = 0x1000, scoped, tag = 'scratch operand']
  %s0 = inlined_call_operand.vmem [shape: f32[8,8], index: 0, kind: input, shape index: {}]
  %s1 = inlined_call_operand.vmem [shape: f32[8,3], index: 1, kind: input, shape index: {}]
  %s2 = inlined_call_operand.vmem [shape: f32[1,3], index: 2, kind: input, shape index: {}]
  %s3 = inlined_call_operand.vmem [shape: f32[8,3], index: 3, kind: output, shape index: {}]
  %s4 = sld [smem:[#allocation0]]
  $region30: #{tpu_custom_call.1} parent=0
    _
  %s6 = ssub.s32 1, %s4
  %s7 = scalar_select 0, %s6, %s4
  // Predicated region
  $region2: #{tpu_custom_call.1} parent=0 // pred_check
    _
  $region3: #{tpu_custom_call.1} parent=0 // pred_check_branch
    %9 = sbr.rel (0) target = $region5
  $region4: #{tpu_custom_call.1} parent=0 // pred_region
    _
  $region5: #{tpu_custom_call.1} parent=0 // pred_fallthru
    _
  // Predicated region
  $region6: #{tpu_custom_call.1} parent=0 // pred_check
    _
  $region7: #{tpu_custom_call.1} parent=0 // pred_check_branch
    %11 = sbr.rel (0) target = $region9
  $region8: #{tpu_custom_call.1} parent=0 // pred_region
    _
  $region9: #{tpu_custom_call.1} parent=0 // pred_fallthru
    _
  // Predicated region
  $region10: #{tpu_custom_call.1} parent=0 // pred_check
    _
  $region11: #{tpu_custom_call.1} parent=0 // pred_check_branch
    %13 = sbr.rel (0) target = $region13
  $region12: #{tpu_custom_call.1} parent=0 // pred_region
    _
  $region13: #{tpu_custom_call.1} parent=0 // pred_fallthru
    _
  %p14 = scmp.eq.s32.totalorder 0, 0
  // Predicated region
  $region14: #{tpu_custom_call.1} parent=0 // pred_check
    %p15 = pneg %p14
  $region15: #{tpu_custom_call.1} parent=0 // pred_check_branch
    %17 = sbr.rel (%p15) target = $region17
  $region16: #{tpu_custom_call.1} parent=0 // pred_region
    %vm18 = vcmask 23552
    %19 = vst.msk [vmem:[#allocation2] sm:$0xff] %vm18, 0.0
  $region17: #{tpu_custom_call.1} parent=0 // pred_fallthru
    _
  %v20 = vld [vmem:[#allocation2] sm:$0xff]
  %v21 = vld [vmem:[%s0] sm:$0xff]
  %v22 = vld [vmem:[%s1] sm:$0xff]
  %vm23 = vcmask 64512
  %v25 = vsel %vm23, %v21, 0
  %27 = vmatpush.msra.mxu0 0.0
  %28 = vmatpush.msra.mxu0 0.0
  %29 = vmatpush.msra.mxu0 0.0
  %30 = vmatpush.msra.mxu0 0.0
  %31 = vmatpush.msra.mxu0 0.0
  %32 = vmatpush.msra.mxu0 0.0
  %33 = vmatpush.msra.mxu0 0.0
  %34 = vmatpush.msra.mxu0 0.0
  %35 = vmatpush.msra.mxu0 0.0
  %36 = vmatpush.msra.mxu0 0.0
  %37 = vmatpush.msra.mxu0 0.0
  %38 = vmatpush.msra.mxu0 0.0
  %39 = vmatpush.msra.mxu0 0.0
  %40 = vmatpush.msra.mxu0 0.0
  %41 = vmatpush.msra.mxu0 0.0
  %42 = vmatpush.msra.mxu0 %v22
  %43 = vmatmul.f32.gmra.mxu0 %v25
  %v44 = vpop.f32.mrf.mxu0
  %v45 = vadd.f32 0.0, %v44
  %46 = vdwg.mxu0
  %v47 = vadd.f32 %v20, %v45
  %vm48 = vcmask 23552
  %49 = vst.msk [vmem:[#allocation2] sm:$0xff] %vm48, %v47
  // Predicated region
  $region18: #{tpu_custom_call.1} parent=0 // pred_check
    %p50 = pneg %p14
  $region19: #{tpu_custom_call.1} parent=0 // pred_check_branch
    %52 = sbr.rel (%p50) target = $region21
  $region20: #{tpu_custom_call.1} parent=0 // pred_region
    %v53 = vld [vmem:[#allocation2] sm:$0xff]
    %v54 = vld [vmem:[%s2] sm:$0x1]
    %v56 = vperm.slane %v54, 0
    %v58 = vmul.f32 %v53, %v56
    %v59 = vadd.f32 %v58, 1.0
    %v60 = vmul.f32 %v59, 0.5
    %61 = vst.msk [vmem:[%s3] sm:$0xff] %vm48, %v60
  $region21: #{tpu_custom_call.1} parent=0 // pred_fallthru
    _
  // Predicated region
  $region22: #{tpu_custom_call.1} parent=0 // pred_check
    _
  $region23: #{tpu_custom_call.1} parent=0 // pred_check_branch
    %63 = sbr.rel (0) target = $region25
  $region24: #{tpu_custom_call.1} parent=0 // pred_region
    _
  $region25: #{tpu_custom_call.1} parent=0 // pred_fallthru
    _
  // Predicated region
  $region26: #{tpu_custom_call.1} parent=0 // pred_check
    _
  $region27: #{tpu_custom_call.1} parent=0 // pred_check_branch
    %65 = sbr.rel (0) target = $region29
  $region28: #{tpu_custom_call.1} parent=0 // pred_region
    _
  $region29: #{tpu_custom_call.1} parent=0 // pred_fallthru
    _

</llo_original>
